<compile_context>
chip_gen: v7x
topology: tpu7x:2x2x1
jax: 0.10.0
libtpu: 0.0.40
codegen_flags: <defaults>
</compile_context>

<pallas_src>
import jax
import jax.numpy as jnp
from jax.experimental import pallas as pl
from jax.experimental.pallas import tpu as pltpu


NUM_EMB = 128   # stand-in for LeNet fc2.weight.shape[1]
OUT_DIM = 10    # output_dim of DAMEmb
PAD = 128       # lane padding of the 10-wide head


def damemb_kernel(x_ref, wc_ref, bc_ref, pool_ref, emb_ref,
                  w1_ref, b1_ref, w2_ref, b2_ref, o_ref):
    # ---- stand-in LeNet backbone: 1x1 channel mix + ReLU + per-batch mean pool
    # x_ref: (B*HW, Cin), wc_ref: (Cin, NUM_EMB), bc_ref: (1, NUM_EMB)
    y = jnp.dot(x_ref[...], wc_ref[...], preferred_element_type=jnp.float32)
    y = jnp.maximum(y + bc_ref[...], 0.0)                       # (B*HW, NUM_EMB)
    # pool_ref: (B_pad, B*HW) block-diagonal 1/HW -> per-batch global average
    # pool, done on the MXU so feats land lane-dense with no transpose.
    feats = jnp.dot(pool_ref[...], y,
                    preferred_element_type=jnp.float32)         # (B_pad, NUM_EMB)

    # ---- embedding: quantize feats to per-sample (first) argmax index and
    #      look up via a one-hot MXU matmul (padded rows are all-zero -> idx 0,
    #      harmless, sliced away by the wrapper).
    Bp, E = feats.shape
    lane = jax.lax.broadcasted_iota(jnp.int32, (Bp, E), 1)
    mx = jnp.max(feats, axis=-1, keepdims=True)
    idx = jnp.min(jnp.where(feats == mx, lane, E),
                  axis=-1, keepdims=True)                       # (B_pad, 1)
    onehot = (lane == idx).astype(jnp.float32)                  # (B_pad, NUM_EMB)
    emb = jnp.dot(onehot, emb_ref[...],
                  preferred_element_type=jnp.float32)           # (B_pad, PAD)

    # ---- head: Linear -> ReLU -> Linear (zero-padded to PAD=128 lanes)
    h = jnp.dot(emb, w1_ref[...],
                preferred_element_type=jnp.float32) + b1_ref[...]
    h = jnp.maximum(h, 0.0)
    o_ref[...] = (jnp.dot(h, w2_ref[...],
                          preferred_element_type=jnp.float32) + b2_ref[...])


def dam_emb_forward(x, params):
    B, C, H, W = x.shape
    HW = H * W
    B_pad = ((B + 7) // 8) * 8  # sublane-dense output tile
    # NHWC-flatten so the channel mix is one lane-dense matmul over all batches.
    x_flat = jnp.transpose(x, (0, 2, 3, 1)).reshape(B * HW, C)
    # Block-diagonal mean-pool matrix: (pool @ y)[b] == mean over batch b's HW
    # rows; rows >= B are zero so padded batch rows are exact zeros.
    pool = jnp.zeros((B_pad, B * HW), jnp.float32)
    pool = pool.at[:B].set(
        jnp.repeat(jnp.eye(B, dtype=jnp.float32), HW, axis=1) / float(HW))

    vmem = pl.BlockSpec(memory_space=pltpu.MemorySpace.VMEM)
    out_pad = pl.pallas_call(
        damemb_kernel,
        out_shape=jax.ShapeDtypeStruct((B_pad, PAD), jnp.float32),
        in_specs=[vmem] * 9,
        out_specs=vmem,
    )(x_flat, params["w_conv"], params["b_conv"], pool, params["emb"],
      params["w1"], params["b1"], params["w2"], params["b2"])
    return out_pad[:B, :OUT_DIM]


def _pad2(a, rows, cols):
    return jnp.zeros((rows, cols), jnp.float32).at[:a.shape[0], :a.shape[1]].set(a)


def init_params(key, in_channels=4, num_emb=NUM_EMB, out_dim=OUT_DIM, pad=PAD):
    k = jax.random.split(key, 7)
    s = 0.1
    # stand-in backbone (1x1 conv), stored pre-transposed (Cin, num_emb)
    w_conv = s * jax.random.normal(k[0], (in_channels, num_emb), jnp.float32)
    b_conv = s * jax.random.normal(k[1], (1, num_emb), jnp.float32)
    # nn.Embedding(num_emb, out_dim) table
    emb = s * jax.random.normal(k[2], (num_emb, out_dim), jnp.float32)
    # layer1 / layer2: Linear(out_dim, out_dim), stored in (in, out) orientation
    w1 = s * jax.random.normal(k[3], (out_dim, out_dim), jnp.float32)
    b1 = s * jax.random.normal(k[4], (1, out_dim), jnp.float32)
    w2 = s * jax.random.normal(k[5], (out_dim, out_dim), jnp.float32)
    b2 = s * jax.random.normal(k[6], (1, out_dim), jnp.float32)
    # Zero-pad the 10-wide head to 128 lanes (exact: padded rows/cols are zero).
    return {
        "w_conv": w_conv,
        "b_conv": b_conv,
        "emb": _pad2(emb, num_emb, pad),
        "w1": _pad2(w1, pad, pad),
        "b1": _pad2(b1, 1, pad),
        "w2": _pad2(w2, pad, pad),
        "b2": _pad2(b2, 1, pad),
    }


if __name__ == "__main__":
    key = jax.random.PRNGKey(0)
    k_x, k_p = jax.random.split(key)

    B, C, H, W = 2, 4, 16, 16
    x = jax.random.normal(k_x, (B, C, H, W), jnp.float32)
    params = init_params(k_p, in_channels=C)

    out = dam_emb_forward(x, params)
    out = jax.block_until_ready(out)

    assert out.shape == (B, OUT_DIM)
    assert bool(jnp.all(jnp.isfinite(out)))
    print("KERNEL_OK")
</pallas_src>

<mosaic_0001>
module attributes {stable_mosaic.version = 11 : i64} {
  func.func @damemb_kernel(%arg0: memref<512x4xf32, #tpu.memory_space<vmem>>, %arg1: memref<4x128xf32, #tpu.memory_space<vmem>>, %arg2: memref<1x128xf32, #tpu.memory_space<vmem>>, %arg3: memref<8x512xf32, #tpu.memory_space<vmem>>, %arg4: memref<128x128xf32, #tpu.memory_space<vmem>>, %arg5: memref<128x128xf32, #tpu.memory_space<vmem>>, %arg6: memref<1x128xf32, #tpu.memory_space<vmem>>, %arg7: memref<128x128xf32, #tpu.memory_space<vmem>>, %arg8: memref<1x128xf32, #tpu.memory_space<vmem>>, %arg9: memref<8x128xf32, #tpu.memory_space<vmem>>) attributes {dimension_semantics = [], scalar_prefetch = 0 : i64, scratch_operands = 0 : i64, tpu.core_type = #tpu.core_type<tc>} {
    %c0 = arith.constant 0 : index
    %c0_0 = arith.constant 0 : index
    %0 = vector.load %arg0[%c0, %c0_0] : memref<512x4xf32, #tpu.memory_space<vmem>>, vector<512x4xf32>
    %c0_1 = arith.constant 0 : index
    %c0_2 = arith.constant 0 : index
    %1 = vector.load %arg1[%c0_1, %c0_2] : memref<4x128xf32, #tpu.memory_space<vmem>>, vector<4x128xf32>
    %cst = arith.constant dense<0.000000e+00> : vector<512x128xf32>
    %2 = tpu.matmul %0, %1, %cst {dimension_numbers = #tpu.dot_dimension_numbers<[1], [0], [0], [1], [0, 0, 1, 1], [], []>} : vector<512x4xf32>, vector<4x128xf32>, vector<512x128xf32> -> vector<512x128xf32>
    %c0_3 = arith.constant 0 : index
    %c0_4 = arith.constant 0 : index
    %3 = vector.load %arg2[%c0_3, %c0_4] : memref<1x128xf32, #tpu.memory_space<vmem>>, vector<1x128xf32>
    %4 = vector.broadcast %3 : vector<1x128xf32> to vector<512x128xf32>
    %5 = arith.addf %2, %4 : vector<512x128xf32>
    %cst_5 = arith.constant 0.000000e+00 : f32
    %6 = vector.broadcast %cst_5 : f32 to vector<512x128xf32>
    %7 = arith.maximumf %5, %6 : vector<512x128xf32>
    %c0_6 = arith.constant 0 : index
    %c0_7 = arith.constant 0 : index
    %8 = vector.load %arg3[%c0_6, %c0_7] : memref<8x512xf32, #tpu.memory_space<vmem>>, vector<8x512xf32>
    %cst_8 = arith.constant dense<0.000000e+00> : vector<8x128xf32>
    %9 = tpu.matmul %8, %7, %cst_8 {dimension_numbers = #tpu.dot_dimension_numbers<[1], [0], [0], [1], [0, 0, 1, 1], [], []>} : vector<8x512xf32>, vector<512x128xf32>, vector<8x128xf32> -> vector<8x128xf32>
    %10 = tpu.iota {dimensions = array<i32: 1>} : vector<8x128xi32>
    %cst_9 = arith.constant dense<0xFF800000> : vector<8xf32>
    %11 = vector.multi_reduction <maximumf>, %9, %cst_9 [1] : vector<8x128xf32> to vector<8xf32>
    %12 = vector.shape_cast %11 : vector<8xf32> to vector<8x1xf32>
    %13 = vector.broadcast %12 : vector<8x1xf32> to vector<8x128xf32>
    %14 = arith.cmpf oeq, %9, %13 : vector<8x128xf32>
    %c128_i32 = arith.constant 128 : i32
    %15 = vector.broadcast %c128_i32 : i32 to vector<8x128xi32>
    %16 = arith.select %14, %10, %15 : vector<8x128xi1>, vector<8x128xi32>
    %cst_10 = arith.constant dense<2147483647> : vector<8xi32>
    %17 = vector.multi_reduction <minsi>, %16, %cst_10 [1] : vector<8x128xi32> to vector<8xi32>
    %18 = vector.shape_cast %17 : vector<8xi32> to vector<8x1xi32>
    %19 = vector.broadcast %18 : vector<8x1xi32> to vector<8x128xi32>
    %20 = arith.cmpi eq, %10, %19 : vector<8x128xi32>
    %21 = arith.extui %20 : vector<8x128xi1> to vector<8x128xi32>
    %22 = arith.sitofp %21 : vector<8x128xi32> to vector<8x128xf32>
    %c0_11 = arith.constant 0 : index
    %c0_12 = arith.constant 0 : index
    %23 = vector.load %arg4[%c0_11, %c0_12] : memref<128x128xf32, #tpu.memory_space<vmem>>, vector<128x128xf32>
    %cst_13 = arith.constant dense<0.000000e+00> : vector<8x128xf32>
    %24 = tpu.matmul %22, %23, %cst_13 {dimension_numbers = #tpu.dot_dimension_numbers<[1], [0], [0], [1], [0, 0, 1, 1], [], []>} : vector<8x128xf32>, vector<128x128xf32>, vector<8x128xf32> -> vector<8x128xf32>
    %c0_14 = arith.constant 0 : index
    %c0_15 = arith.constant 0 : index
    %25 = vector.load %arg5[%c0_14, %c0_15] : memref<128x128xf32, #tpu.memory_space<vmem>>, vector<128x128xf32>
    %cst_16 = arith.constant dense<0.000000e+00> : vector<8x128xf32>
    %26 = tpu.matmul %24, %25, %cst_16 {dimension_numbers = #tpu.dot_dimension_numbers<[1], [0], [0], [1], [0, 0, 1, 1], [], []>} : vector<8x128xf32>, vector<128x128xf32>, vector<8x128xf32> -> vector<8x128xf32>
    %c0_17 = arith.constant 0 : index
    %c0_18 = arith.constant 0 : index
    %27 = vector.load %arg6[%c0_17, %c0_18] : memref<1x128xf32, #tpu.memory_space<vmem>>, vector<1x128xf32>
    %28 = vector.broadcast %27 : vector<1x128xf32> to vector<8x128xf32>
    %29 = arith.addf %26, %28 : vector<8x128xf32>
    %cst_19 = arith.constant 0.000000e+00 : f32
    %30 = vector.broadcast %cst_19 : f32 to vector<8x128xf32>
    %31 = arith.maximumf %29, %30 : vector<8x128xf32>
    %c0_20 = arith.constant 0 : index
    %c0_21 = arith.constant 0 : index
    %32 = vector.load %arg7[%c0_20, %c0_21] : memref<128x128xf32, #tpu.memory_space<vmem>>, vector<128x128xf32>
    %cst_22 = arith.constant dense<0.000000e+00> : vector<8x128xf32>
    %33 = tpu.matmul %31, %32, %cst_22 {dimension_numbers = #tpu.dot_dimension_numbers<[1], [0], [0], [1], [0, 0, 1, 1], [], []>} : vector<8x128xf32>, vector<128x128xf32>, vector<8x128xf32> -> vector<8x128xf32>
    %c0_23 = arith.constant 0 : index
    %c0_24 = arith.constant 0 : index
    %34 = vector.load %arg8[%c0_23, %c0_24] : memref<1x128xf32, #tpu.memory_space<vmem>>, vector<1x128xf32>
    %35 = vector.broadcast %34 : vector<1x128xf32> to vector<8x128xf32>
    %36 = arith.addf %33, %35 : vector<8x128xf32>
    %c0_25 = arith.constant 0 : index
    %c0_26 = arith.constant 0 : index
    %37 = vector.load %arg9[%c0_25, %c0_26] : memref<8x128xf32, #tpu.memory_space<vmem>>, vector<8x128xf32>
    tpu.vector_store %arg9[%c0_25, %c0_26], %36 {strides = array<i32>} : memref<8x128xf32, #tpu.memory_space<vmem>>, vector<8x128xf32>,
    return
  }
}

</mosaic_0001>

<llo_original>
// kernel: tpu_custom_call.1
$region0: #{tpu_custom_call.1}
  #allocation0 [shape = 'u32[]', space=smem, size = 0x4, offset = 0x4, fixed_abs, tag = 'smem constant byte address 0x4 - core index']
  #allocation1 [shape = 'u32[144,128]{1,0:T(1,128)}', space=vmem, size = 0x12000, scoped, tag = 'internal scratch']
  %s0 = inlined_call_operand.vmem [shape: f32[512,4], index: 0, kind: input, shape index: {}]
  %s1 = inlined_call_operand.vmem [shape: f32[4,128], index: 1, kind: input, shape index: {}]
  %s2 = inlined_call_operand.vmem [shape: f32[1,128], index: 2, kind: input, shape index: {}]
  %s3 = inlined_call_operand.vmem [shape: f32[8,512], index: 3, kind: input, shape index: {}]
  %s4 = inlined_call_operand.vmem [shape: f32[128,128], index: 4, kind: input, shape index: {}]
  %s5 = inlined_call_operand.vmem [shape: f32[128,128], index: 5, kind: input, shape index: {}]
  %s6 = inlined_call_operand.vmem [shape: f32[1,128], index: 6, kind: input, shape index: {}]
  %s7 = inlined_call_operand.vmem [shape: f32[128,128], index: 7, kind: input, shape index: {}]
  %s8 = inlined_call_operand.vmem [shape: f32[1,128], index: 8, kind: input, shape index: {}]
  %s9 = inlined_call_operand.hbm [shape: f32[8,128], index: 9, kind: output, shape index: {}]
  %s10 = sld [smem:[#allocation0]]
  $region46: #{tpu_custom_call.1} parent=0
    _
  %s12 = ssub.s32 1, %s10
  %s13 = scalar_select 0, %s12, %s10
  $region1: #{tpu_custom_call.1} parent=0
    #allocation2 [shape = 'u8[4096]{0}', space=vmem, size = 0x1000, scoped, tag = 'output window, operand 0, single buffered']
    #allocation3 [shape = 's32[1]{0}', space=sflag, size = 0x4, scoped, tag = 'scoped memory for tpu_custom_call.1']
    %14 = vsyncpa [#allocation3], 0
    // Predicated region
    $region2: #{tpu_custom_call.1} parent=1 // pred_check
      _
    $region3: #{tpu_custom_call.1} parent=1 // pred_check_branch
      %16 = sbr.rel (0) target = $region5
    $region4: #{tpu_custom_call.1} parent=1 // pred_region
      _
    $region5: #{tpu_custom_call.1} parent=1 // pred_fallthru
      _
    // Predicated region
    $region6: #{tpu_custom_call.1} parent=1 // pred_check
      _
    $region7: #{tpu_custom_call.1} parent=1 // pred_check_branch
      %18 = sbr.rel (0) target = $region9
    $region8: #{tpu_custom_call.1} parent=1 // pred_region
      _
    $region9: #{tpu_custom_call.1} parent=1 // pred_fallthru
      _
    // Predicated region
    $region10: #{tpu_custom_call.1} parent=1 // pred_check
      _
    $region11: #{tpu_custom_call.1} parent=1 // pred_check_branch
      %20 = sbr.rel (0) target = $region13
    $region12: #{tpu_custom_call.1} parent=1 // pred_region
      _
    $region13: #{tpu_custom_call.1} parent=1 // pred_fallthru
      _
    // Predicated region
    $region14: #{tpu_custom_call.1} parent=1 // pred_check
      _
    $region15: #{tpu_custom_call.1} parent=1 // pred_check_branch
      %22 = sbr.rel (0) target = $region17
    $region16: #{tpu_custom_call.1} parent=1 // pred_region
      _
    $region17: #{tpu_custom_call.1} parent=1 // pred_fallthru
      _
    // Predicated region
    $region18: #{tpu_custom_call.1} parent=1 // pred_check
      _
    $region19: #{tpu_custom_call.1} parent=1 // pred_check_branch
      %24 = sbr.rel (0) target = $region21
    $region20: #{tpu_custom_call.1} parent=1 // pred_region
      _
    $region21: #{tpu_custom_call.1} parent=1 // pred_fallthru
      _
    // Predicated region
    $region22: #{tpu_custom_call.1} parent=1 // pred_check
      _
    $region23: #{tpu_custom_call.1} parent=1 // pred_check_branch
      %26 = sbr.rel (0) target = $region25
    $region24: #{tpu_custom_call.1} parent=1 // pred_region
      _
    $region25: #{tpu_custom_call.1} parent=1 // pred_fallthru
      _
    // Predicated region
    $region26: #{tpu_custom_call.1} parent=1 // pred_check
      _
    $region27: #{tpu_custom_call.1} parent=1 // pred_check_branch
      %28 = sbr.rel (0) target = $region29
    $region28: #{tpu_custom_call.1} parent=1 // pred_region
      _
    $region29: #{tpu_custom_call.1} parent=1 // pred_fallthru
      _
    // Predicated region
    $region30: #{tpu_custom_call.1} parent=1 // pred_check
      _
    $region31: #{tpu_custom_call.1} parent=1 // pred_check_branch
      %30 = sbr.rel (0) target = $region33
    $region32: #{tpu_custom_call.1} parent=1 // pred_region
      _
    $region33: #{tpu_custom_call.1} parent=1 // pred_fallthru
      _
    // Predicated region
    $region34: #{tpu_custom_call.1} parent=1 // pred_check
      _
    $region35: #{tpu_custom_call.1} parent=1 // pred_check_branch
      %32 = sbr.rel (0) target = $region37
    $region36: #{tpu_custom_call.1} parent=1 // pred_region
      _
    $region37: #{tpu_custom_call.1} parent=1 // pred_fallthru
      _
    %v33 = vld [vmem:[%s0] sm:$0xff]
    %v34 = vld [vmem:[%s0 + $0x8] sm:$0xff]
    %v35 = vld [vmem:[%s0 + $0x10] sm:$0xff]
    %v36 = vld [vmem:[%s0 + $0x18] sm:$0xff]
    %v37 = vld [vmem:[%s0 + $0x20] sm:$0xff]
    %v38 = vld [vmem:[%s0 + $0x28] sm:$0xff]
    %v39 = vld [vmem:[%s0 + $0x30] sm:$0xff]
    %v40 = vld [vmem:[%s0 + $0x38] sm:$0xff]
    %v41 = vld [vmem:[%s0 + $0x40] sm:$0xff]
    %v42 = vld [vmem:[%s0 + $0x48] sm:$0xff]
    %v43 = vld [vmem:[%s0 + $0x50] sm:$0xff]
    %v44 = vld [vmem:[%s0 + $0x58] sm:$0xff]
    %v45 = vld [vmem:[%s0 + $0x60] sm:$0xff]
    %v46 = vld [vmem:[%s0 + $0x68] sm:$0xff]
    %v47 = vld [vmem:[%s0 + $0x70] sm:$0xff]
    %v48 = vld [vmem:[%s0 + $0x78] sm:$0xff]
    %v49 = vld [vmem:[%s0 + $0x80] sm:$0xff]
    %v50 = vld [vmem:[%s0 + $0x88] sm:$0xff]
    %v51 = vld [vmem:[%s0 + $0x90] sm:$0xff]
    %v52 = vld [vmem:[%s0 + $0x98] sm:$0xff]
    %v53 = vld [vmem:[%s0 + $0xa0] sm:$0xff]
    %v54 = vld [vmem:[%s0 + $0xa8] sm:$0xff]
    %v55 = vld [vmem:[%s0 + $0xb0] sm:$0xff]
    %v56 = vld [vmem:[%s0 + $0xb8] sm:$0xff]
    %v57 = vld [vmem:[%s0 + $0xc0] sm:$0xff]
    %v58 = vld [vmem:[%s0 + $0xc8] sm:$0xff]
    %v59 = vld [vmem:[%s0 + $0xd0] sm:$0xff]
    %v60 = vld [vmem:[%s0 + $0xd8] sm:$0xff]
    %v61 = vld [vmem:[%s0 + $0xe0] sm:$0xff]
    %v62 = vld [vmem:[%s0 + $0xe8] sm:$0xff]
    %v63 = vld [vmem:[%s0 + $0xf0] sm:$0xff]
    %v64 = vld [vmem:[%s0 + $0xf8] sm:$0xff]
    %v65 = vld [vmem:[%s0 + $0x100] sm:$0xff]
    %v66 = vld [vmem:[%s0 + $0x108] sm:$0xff]
    %v67 = vld [vmem:[%s0 + $0x110] sm:$0xff]
    %v68 = vld [vmem:[%s0 + $0x118] sm:$0xff]
    %v69 = vld [vmem:[%s0 + $0x120] sm:$0xff]
    %v70 = vld [vmem:[%s0 + $0x128] sm:$0xff]
    %v71 = vld [vmem:[%s0 + $0x130] sm:$0xff]
    %v72 = vld [vmem:[%s0 + $0x138] sm:$0xff]
    %v73 = vld [vmem:[%s0 + $0x140] sm:$0xff]
    %v74 = vld [vmem:[%s0 + $0x148] sm:$0xff]
    %v75 = vld [vmem:[%s0 + $0x150] sm:$0xff]
    %v76 = vld [vmem:[%s0 + $0x158] sm:$0xff]
    %v77 = vld [vmem:[%s0 + $0x160] sm:$0xff]
    %v78 = vld [vmem:[%s0 + $0x168] sm:$0xff]
    %v79 = vld [vmem:[%s0 + $0x170] sm:$0xff]
    %v80 = vld [vmem:[%s0 + $0x178] sm:$0xff]
    %v81 = vld [vmem:[%s0 + $0x180] sm:$0xff]
    %v82 = vld [vmem:[%s0 + $0x188] sm:$0xff]
    %v83 = vld [vmem:[%s0 + $0x190] sm:$0xff]
    %v84 = vld [vmem:[%s0 + $0x198] sm:$0xff]
    %v85 = vld [vmem:[%s0 + $0x1a0] sm:$0xff]
    %v86 = vld [vmem:[%s0 + $0x1a8] sm:$0xff]
    %v87 = vld [vmem:[%s0 + $0x1b0] sm:$0xff]
    %v88 = vld [vmem:[%s0 + $0x1b8] sm:$0xff]
    %v89 = vld [vmem:[%s0 + $0x1c0] sm:$0xff]
    %v90 = vld [vmem:[%s0 + $0x1c8] sm:$0xff]
    %v91 = vld [vmem:[%s0 + $0x1d0] sm:$0xff]
    %v92 = vld [vmem:[%s0 + $0x1d8] sm:$0xff]
    %v93 = vld [vmem:[%s0 + $0x1e0] sm:$0xff]
    %v94 = vld [vmem:[%s0 + $0x1e8] sm:$0xff]
    %v95 = vld [vmem:[%s0 + $0x1f0] sm:$0xff]
    %v96 = vld [vmem:[%s0 + $0x1f8] sm:$0xff]
    %v97 = vld [vmem:[%s1] sm:$0xf]
    %v98 = vld [vmem:[%s2] sm:$0x1]
    %v100 = vlaneseq
    %v101 = vshrl.u32 %v100, 7
    %v102 = vsub.s32 0, %v101
    %v103 = vrot.slane %v98, %v102
    %vm105 = vcmask 31744
    %v107 = vsel %vm105, %v33, 0
    %v110 = vsel %vm105, %v34, 0
    %v113 = vsel %vm105, %v35, 0
    %v116 = vsel %vm105, %v36, 0
    %v119 = vsel %vm105, %v37, 0
    %v122 = vsel %vm105, %v38, 0
    %v125 = vsel %vm105, %v39, 0
    %v128 = vsel %vm105, %v40, 0
    %v131 = vsel %vm105, %v41, 0
    %v134 = vsel %vm105, %v42, 0
    %v137 = vsel %vm105, %v43, 0
    %v140 = vsel %vm105, %v44, 0
    %v143 = vsel %vm105, %v45, 0
    %v146 = vsel %vm105, %v46, 0
    %v149 = vsel %vm105, %v47, 0
    %v152 = vsel %vm105, %v48, 0
    %v155 = vsel %vm105, %v49, 0
    %v158 = vsel %vm105, %v50, 0
    %v161 = vsel %vm105, %v51, 0
    %v164 = vsel %vm105, %v52, 0
    %v167 = vsel %vm105, %v53, 0
    %v170 = vsel %vm105, %v54, 0
    %v173 = vsel %vm105, %v55, 0
    %v176 = vsel %vm105, %v56, 0
    %v179 = vsel %vm105, %v57, 0
    %v182 = vsel %vm105, %v58, 0
    %v185 = vsel %vm105, %v59, 0
    %v188 = vsel %vm105, %v60, 0
    %v191 = vsel %vm105, %v61, 0
    %v194 = vsel %vm105, %v62, 0
    %v197 = vsel %vm105, %v63, 0
    %v200 = vsel %vm105, %v64, 0
    %v203 = vsel %vm105, %v65, 0
    %v206 = vsel %vm105, %v66, 0
    %v209 = vsel %vm105, %v67, 0
    %v212 = vsel %vm105, %v68, 0
    %v215 = vsel %vm105, %v69, 0
    %v218 = vsel %vm105, %v70, 0
    %v221 = vsel %vm105, %v71, 0
    %v224 = vsel %vm105, %v72, 0
    %v227 = vsel %vm105, %v73, 0
    %v230 = vsel %vm105, %v74, 0
    %v233 = vsel %vm105, %v75, 0
    %v236 = vsel %vm105, %v76, 0
    %v239 = vsel %vm105, %v77, 0
    %v242 = vsel %vm105, %v78, 0
    %v245 = vsel %vm105, %v79, 0
    %v248 = vsel %vm105, %v80, 0
    %v251 = vsel %vm105, %v81, 0
    %v254 = vsel %vm105, %v82, 0
    %v257 = vsel %vm105, %v83, 0
    %v260 = vsel %vm105, %v84, 0
    %v263 = vsel %vm105, %v85, 0
    %v266 = vsel %vm105, %v86, 0
    %v269 = vsel %vm105, %v87, 0
    %v272 = vsel %vm105, %v88, 0
    %v275 = vsel %vm105, %v89, 0
    %v278 = vsel %vm105, %v90, 0
    %v281 = vsel %vm105, %v91, 0
    %v284 = vsel %vm105, %v92, 0
    %v287 = vsel %vm105, %v93, 0
    %v290 = vsel %vm105, %v94, 0
    %v293 = vsel %vm105, %v95, 0
    %v296 = vsel %vm105, %v96, 0
    %vm298 = vcmask 1043456
    %v300 = vsel %vm298, %v97, 0
    %302 = vmatprep.subr.mxu0 0.0
    %303 = vmatpush1.msra.mxu0 %v300
    %304 = vmatprep.subr.mxu0 0.0
    %305 = vmatpush1.msra.mxu0 0.0
    %306 = vmatprep.subr.mxu0 0.0
    %307 = vmatpush1.msra.mxu0 0.0
    %308 = vmatprep.subr.mxu0 0.0
    %309 = vmatpush1.msra.mxu0 0.0
    %310 = vmatprep.subr.mxu0 0.0
    %311 = vmatpush1.msra.mxu0 0.0
    %312 = vmatprep.subr.mxu0 0.0
    %313 = vmatpush1.msra.mxu0 0.0
    %314 = vmatprep.subr.mxu0 0.0
    %315 = vmatpush1.msra.mxu0 0.0
    %316 = vmatprep.subr.mxu0 0.0
    %317 = vmatpush1.msra.mxu0 0.0
    %318 = vmatprep.subr.mxu0 0.0
    %319 = vmatpush1.msra.mxu0 0.0
    %320 = vmatprep.subr.mxu0 0.0
    %321 = vmatpush1.msra.mxu0 0.0
    %322 = vmatprep.subr.mxu0 0.0
    %323 = vmatpush1.msra.mxu0 0.0
    %324 = vmatprep.subr.mxu0 0.0
    %325 = vmatpush1.msra.mxu0 0.0
    %326 = vmatprep.subr.mxu0 0.0
    %327 = vmatpush1.msra.mxu0 0.0
    %328 = vmatprep.subr.mxu0 0.0
    %329 = vmatpush1.msra.mxu0 0.0
    %330 = vmatprep.subr.mxu0 0.0
    %331 = vmatpush1.msra.mxu0 0.0
    %332 = vmatprep.subr.mxu0 0.0
    %333 = vmatpush1.msra.mxu0 0.0
    %334 = vmatprep.subr.mxu0 0.0
    %335 = vmatpush1.msra.mxu0 0.0
    %336 = vmatprep.subr.mxu0 0.0
    %337 = vmatpush1.msra.mxu0 0.0
    %338 = vmatprep.subr.mxu0 0.0
    %339 = vmatpush1.msra.mxu0 0.0
    %340 = vmatprep.subr.mxu0 0.0
    %341 = vmatpush1.msra.mxu0 0.0
    %342 = vmatprep.subr.mxu0 0.0
    %343 = vmatpush1.msra.mxu0 0.0
    %344 = vmatprep.subr.mxu0 0.0
    %345 = vmatpush1.msra.mxu0 0.0
    %346 = vmatprep.subr.mxu0 0.0
    %347 = vmatpush1.msra.mxu0 0.0
    %348 = vmatprep.subr.mxu0 0.0
    %349 = vmatpush1.msra.mxu0 0.0
    %350 = vmatprep.subr.mxu0 0.0
    %351 = vmatpush1.msra.mxu0 0.0
    %352 = vmatprep.subr.mxu0 0.0
    %353 = vmatpush1.msra.mxu0 0.0
    %354 = vmatprep.subr.mxu0 0.0
    %355 = vmatpush1.msra.mxu0 0.0
    %356 = vmatprep.subr.mxu0 0.0
    %357 = vmatpush1.msra.mxu0 0.0
    %358 = vmatprep.subr.mxu0 0.0
    %359 = vmatpush1.msra.mxu0 0.0
    %360 = vmatprep.subr.mxu0 0.0
    %361 = vmatpush1.msra.mxu0 0.0
    %362 = vmatprep.subr.mxu0 0.0
    %363 = vmatpush1.msra.mxu0 0.0
    %364 = vmatprep.subr.mxu0 0.0
    %365 = vmatpush1.msra.mxu0 0.0
    %366 = vmatprep.mubr.f32.mxu0 0.0
    %367 = vmatmul.mubr.f32.gmra.mrb[0].mxu0 %v107
    %v368 = vpop.f32.mrb[0].mxu0
    %v369 = vadd.f32 %v103, %v368
    %v370 = vpop.f32.mrb[0].mxu0
    %371 = vmatprep.mubr.f32.mxu0 0.0
    %372 = vmatmul.mubr.f32.gmra.mrb[0].mxu0 %v110
    %v373 = vpop.f32.mrb[0].mxu0
    %v374 = vadd.f32 %v103, %v373
    %v375 = vpop.f32.mrb[0].mxu0
    %376 = vmatprep.mubr.f32.mxu0 0.0
    %377 = vmatmul.mubr.f32.gmra.mrb[0].mxu0 %v113
    %v378 = vpop.f32.mrb[0].mxu0
    %v379 = vadd.f32 %v103, %v378
    %v380 = vpop.f32.mrb[0].mxu0
    %381 = vmatprep.mubr.f32.mxu0 0.0
    %382 = vmatmul.mubr.f32.gmra.mrb[0].mxu0 %v116
    %v383 = vpop.f32.mrb[0].mxu0
    %v384 = vadd.f32 %v103, %v383
    %v385 = vpop.f32.mrb[0].mxu0
    %386 = vmatprep.mubr.f32.mxu0 0.0
    %387 = vmatmul.mubr.f32.gmra.mrb[0].mxu0 %v119
    %v388 = vpop.f32.mrb[0].mxu0
    %v389 = vadd.f32 %v103, %v388
    %v390 = vpop.f32.mrb[0].mxu0
    %391 = vmatprep.mubr.f32.mxu0 0.0
    %392 = vmatmul.mubr.f32.gmra.mrb[0].mxu0 %v122
    %v393 = vpop.f32.mrb[0].mxu0
    %v394 = vadd.f32 %v103, %v393
    %v395 = vpop.f32.mrb[0].mxu0
    %396 = vmatprep.mubr.f32.mxu0 0.0
    %397 = vmatmul.mubr.f32.gmra.mrb[0].mxu0 %v125
    %v398 = vpop.f32.mrb[0].mxu0
    %v399 = vadd.f32 %v103, %v398
    %v400 = vpop.f32.mrb[0].mxu0
    %401 = vmatprep.mubr.f32.mxu0 0.0
    %402 = vmatmul.mubr.f32.gmra.mrb[0].mxu0 %v128
    %v403 = vpop.f32.mrb[0].mxu0
    %v404 = vadd.f32 %v103, %v403
    %v405 = vpop.f32.mrb[0].mxu0
    %406 = vmatprep.mubr.f32.mxu0 0.0
    %407 = vmatmul.mubr.f32.gmra.mrb[0].mxu0 %v131
    %v408 = vpop.f32.mrb[0].mxu0
    %v409 = vadd.f32 %v103, %v408
    %v410 = vpop.f32.mrb[0].mxu0
    %411 = vmatprep.mubr.f32.mxu0 0.0
    %412 = vmatmul.mubr.f32.gmra.mrb[0].mxu0 %v134
    %v413 = vpop.f32.mrb[0].mxu0
    %v414 = vadd.f32 %v103, %v413
    %v415 = vpop.f32.mrb[0].mxu0
    %416 = vmatprep.mubr.f32.mxu0 0.0
    %417 = vmatmul.mubr.f32.gmra.mrb[0].mxu0 %v137
    %v418 = vpop.f32.mrb[0].mxu0
    %v419 = vadd.f32 %v103, %v418
    %v420 = vpop.f32.mrb[0].mxu0
    %421 = vmatprep.mubr.f32.mxu0 0.0
    %422 = vmatmul.mubr.f32.gmra.mrb[0].mxu0 %v140
    %v423 = vpop.f32.mrb[0].mxu0
    %v424 = vadd.f32 %v103, %v423
    %v425 = vpop.f32.mrb[0].mxu0
    %426 = vmatprep.mubr.f32.mxu0 0.0
    %427 = vmatmul.mubr.f32.gmra.mrb[0].mxu0 %v143
    %v428 = vpop.f32.mrb[0].mxu0
    %v429 = vadd.f32 %v103, %v428
    %v430 = vpop.f32.mrb[0].mxu0
    %431 = vmatprep.mubr.f32.mxu0 0.0
    %432 = vmatmul.mubr.f32.gmra.mrb[0].mxu0 %v146
    %v433 = vpop.f32.mrb[0].mxu0
    %v434 = vadd.f32 %v103, %v433
    %v435 = vpop.f32.mrb[0].mxu0
    %436 = vmatprep.mubr.f32.mxu0 0.0
    %437 = vmatmul.mubr.f32.gmra.mrb[0].mxu0 %v149
    %v438 = vpop.f32.mrb[0].mxu0
    %v439 = vadd.f32 %v103, %v438
    %v440 = vpop.f32.mrb[0].mxu0
    %441 = vmatprep.mubr.f32.mxu0 0.0
    %442 = vmatmul.mubr.f32.gmra.mrb[0].mxu0 %v152
    %v443 = vpop.f32.mrb[0].mxu0
    %v444 = vadd.f32 %v103, %v443
    %v445 = vpop.f32.mrb[0].mxu0
    %446 = vmatprep.mubr.f32.mxu0 0.0
    %447 = vmatmul.mubr.f32.gmra.mrb[0].mxu0 %v155
    %v448 = vpop.f32.mrb[0].mxu0
    %v449 = vadd.f32 %v103, %v448
    %v450 = vpop.f32.mrb[0].mxu0
    %451 = vmatprep.mubr.f32.mxu0 0.0
    %452 = vmatmul.mubr.f32.gmra.mrb[0].mxu0 %v158
    %v453 = vpop.f32.mrb[0].mxu0
    %v454 = vadd.f32 %v103, %v453
    %v455 = vpop.f32.mrb[0].mxu0
    %456 = vmatprep.mubr.f32.mxu0 0.0
    %457 = vmatmul.mubr.f32.gmra.mrb[0].mxu0 %v161
    %v458 = vpop.f32.mrb[0].mxu0
    %v459 = vadd.f32 %v103, %v458
    %v460 = vpop.f32.mrb[0].mxu0
    %461 = vmatprep.mubr.f32.mxu0 0.0
    %462 = vmatmul.mubr.f32.gmra.mrb[0].mxu0 %v164
    %v463 = vpop.f32.mrb[0].mxu0
    %v464 = vadd.f32 %v103, %v463
    %v465 = vpop.f32.mrb[0].mxu0
    %466 = vmatprep.mubr.f32.mxu0 0.0
    %467 = vmatmul.mubr.f32.gmra.mrb[0].mxu0 %v167
    %v468 = vpop.f32.mrb[0].mxu0
    %v469 = vadd.f32 %v103, %v468
    %v470 = vpop.f32.mrb[0].mxu0
    %471 = vmatprep.mubr.f32.mxu0 0.0
    %472 = vmatmul.mubr.f32.gmra.mrb[0].mxu0 %v170
    %v473 = vpop.f32.mrb[0].mxu0
    %v474 = vadd.f32 %v103, %v473
    %v475 = vpop.f32.mrb[0].mxu0
    %476 = vmatprep.mubr.f32.mxu0 0.0
    %477 = vmatmul.mubr.f32.gmra.mrb[0].mxu0 %v173
    %v478 = vpop.f32.mrb[0].mxu0
    %v479 = vadd.f32 %v103, %v478
    %v480 = vpop.f32.mrb[0].mxu0
    %481 = vmatprep.mubr.f32.mxu0 0.0
    %482 = vmatmul.mubr.f32.gmra.mrb[0].mxu0 %v176
    %v483 = vpop.f32.mrb[0].mxu0
    %v484 = vadd.f32 %v103, %v483
    %v485 = vpop.f32.mrb[0].mxu0
    %486 = vmatprep.mubr.f32.mxu0 0.0
    %487 = vmatmul.mubr.f32.gmra.mrb[0].mxu0 %v179
    %v488 = vpop.f32.mrb[0].mxu0
    %v489 = vadd.f32 %v103, %v488
    %v490 = vpop.f32.mrb[0].mxu0
    %491 = vmatprep.mubr.f32.mxu0 0.0
    %492 = vmatmul.mubr.f32.gmra.mrb[0].mxu0 %v182
    %v493 = vpop.f32.mrb[0].mxu0
    %v494 = vadd.f32 %v103, %v493
    %v495 = vpop.f32.mrb[0].mxu0
    %496 = vmatprep.mubr.f32.mxu0 0.0
    %497 = vmatmul.mubr.f32.gmra.mrb[0].mxu0 %v185
    %v498 = vpop.f32.mrb[0].mxu0
    %v499 = vadd.f32 %v103, %v498
    %v500 = vpop.f32.mrb[0].mxu0
    %501 = vmatprep.mubr.f32.mxu0 0.0
    %502 = vmatmul.mubr.f32.gmra.mrb[0].mxu0 %v188
    %v503 = vpop.f32.mrb[0].mxu0
    %v504 = vadd.f32 %v103, %v503
    %v505 = vpop.f32.mrb[0].mxu0
    %506 = vmatprep.mubr.f32.mxu0 0.0
    %507 = vmatmul.mubr.f32.gmra.mrb[0].mxu0 %v191
    %v508 = vpop.f32.mrb[0].mxu0
    %v509 = vadd.f32 %v103, %v508
    %v510 = vpop.f32.mrb[0].mxu0
    %511 = vmatprep.mubr.f32.mxu0 0.0
    %512 = vmatmul.mubr.f32.gmra.mrb[0].mxu0 %v194
    %v513 = vpop.f32.mrb[0].mxu0
    %v514 = vadd.f32 %v103, %v513
    %v515 = vpop.f32.mrb[0].mxu0
    %516 = vmatprep.mubr.f32.mxu0 0.0
    %517 = vmatmul.mubr.f32.gmra.mrb[0].mxu0 %v197
    %v518 = vpop.f32.mrb[0].mxu0
    %v519 = vadd.f32 %v103, %v518
    %v520 = vpop.f32.mrb[0].mxu0
    %521 = vmatprep.mubr.f32.mxu0 0.0
    %522 = vmatmul.mubr.f32.gmra.mrb[0].mxu0 %v200
    %v523 = vpop.f32.mrb[0].mxu0
    %v524 = vadd.f32 %v103, %v523
    %v525 = vpop.f32.mrb[0].mxu0
    %526 = vmatprep.mubr.f32.mxu0 0.0
    %527 = vmatmul.mubr.f32.gmra.mrb[0].mxu0 %v203
    %v528 = vpop.f32.mrb[0].mxu0
    %v529 = vadd.f32 %v103, %v528
    %v530 = vpop.f32.mrb[0].mxu0
    %531 = vmatprep.mubr.f32.mxu0 0.0
    %532 = vmatmul.mubr.f32.gmra.mrb[0].mxu0 %v206
    %v533 = vpop.f32.mrb[0].mxu0
    %v534 = vadd.f32 %v103, %v533
    %v535 = vpop.f32.mrb[0].mxu0
    %536 = vmatprep.mubr.f32.mxu0 0.0
    %537 = vmatmul.mubr.f32.gmra.mrb[0].mxu0 %v209
    %v538 = vpop.f32.mrb[0].mxu0
    %v539 = vadd.f32 %v103, %v538
    %v540 = vpop.f32.mrb[0].mxu0
    %541 = vmatprep.mubr.f32.mxu0 0.0
    %542 = vmatmul.mubr.f32.gmra.mrb[0].mxu0 %v212
    %v543 = vpop.f32.mrb[0].mxu0
    %v544 = vadd.f32 %v103, %v543
    %v545 = vpop.f32.mrb[0].mxu0
    %546 = vmatprep.mubr.f32.mxu0 0.0
    %547 = vmatmul.mubr.f32.gmra.mrb[0].mxu0 %v215
    %v548 = vpop.f32.mrb[0].mxu0
    %v549 = vadd.f32 %v103, %v548
    %v550 = vpop.f32.mrb[0].mxu0
    %551 = vmatprep.mubr.f32.mxu0 0.0
    %552 = vmatmul.mubr.f32.gmra.mrb[0].mxu0 %v218
    %v553 = vpop.f32.mrb[0].mxu0
    %v554 = vadd.f32 %v103, %v553
    %v555 = vpop.f32.mrb[0].mxu0
    %556 = vmatprep.mubr.f32.mxu0 0.0
    %557 = vmatmul.mubr.f32.gmra.mrb[0].mxu0 %v221
    %v558 = vpop.f32.mrb[0].mxu0
    %v559 = vadd.f32 %v103, %v558
    %v560 = vpop.f32.mrb[0].mxu0
    %561 = vmatprep.mubr.f32.mxu0 0.0
    %562 = vmatmul.mubr.f32.gmra.mrb[0].mxu0 %v224
    %v563 = vpop.f32.mrb[0].mxu0
    %v564 = vadd.f32 %v103, %v563
    %v565 = vpop.f32.mrb[0].mxu0
    %566 = vmatprep.mubr.f32.mxu0 0.0
    %567 = vmatmul.mubr.f32.gmra.mrb[0].mxu0 %v227
    %v568 = vpop.f32.mrb[0].mxu0
    %v569 = vadd.f32 %v103, %v568
    %v570 = vpop.f32.mrb[0].mxu0
    %571 = vmatprep.mubr.f32.mxu0 0.0
    %572 = vmatmul.mubr.f32.gmra.mrb[0].mxu0 %v230
    %v573 = vpop.f32.mrb[0].mxu0
    %v574 = vadd.f32 %v103, %v573
    %v575 = vpop.f32.mrb[0].mxu0
    %576 = vmatprep.mubr.f32.mxu0 0.0
    %577 = vmatmul.mubr.f32.gmra.mrb[0].mxu0 %v233
    %v578 = vpop.f32.mrb[0].mxu0
    %v579 = vadd.f32 %v103, %v578
    %v580 = vpop.f32.mrb[0].mxu0
    %581 = vmatprep.mubr.f32.mxu0 0.0
    %582 = vmatmul.mubr.f32.gmra.mrb[0].mxu0 %v236
    %v583 = vpop.f32.mrb[0].mxu0
    %v584 = vadd.f32 %v103, %v583
    %v585 = vpop.f32.mrb[0].mxu0
    %586 = vmatprep.mubr.f32.mxu0 0.0
    %587 = vmatmul.mubr.f32.gmra.mrb[0].mxu0 %v239
    %v588 = vpop.f32.mrb[0].mxu0
    %v589 = vadd.f32 %v103, %v588
    %v590 = vpop.f32.mrb[0].mxu0
    %591 = vmatprep.mubr.f32.mxu0 0.0
    %592 = vmatmul.mubr.f32.gmra.mrb[0].mxu0 %v242
    %v593 = vpop.f32.mrb[0].mxu0
    %v594 = vadd.f32 %v103, %v593
    %v595 = vpop.f32.mrb[0].mxu0
    %596 = vmatprep.mubr.f32.mxu0 0.0
    %597 = vmatmul.mubr.f32.gmra.mrb[0].mxu0 %v245
    %v598 = vpop.f32.mrb[0].mxu0
    %v599 = vadd.f32 %v103, %v598
    %v600 = vpop.f32.mrb[0].mxu0
    %601 = vmatprep.mubr.f32.mxu0 0.0
    %602 = vmatmul.mubr.f32.gmra.mrb[0].mxu0 %v248
    %v603 = vpop.f32.mrb[0].mxu0
    %v604 = vadd.f32 %v103, %v603
    %v605 = vpop.f32.mrb[0].mxu0
    %606 = vmatprep.mubr.f32.mxu0 0.0
    %607 = vmatmul.mubr.f32.gmra.mrb[0].mxu0 %v251
    %v608 = vpop.f32.mrb[0].mxu0
    %v609 = vadd.f32 %v103, %v608
    %v610 = vpop.f32.mrb[0].mxu0
    %611 = vmatprep.mubr.f32.mxu0 0.0
    %612 = vmatmul.mubr.f32.gmra.mrb[0].mxu0 %v254
    %v613 = vpop.f32.mrb[0].mxu0
    %v614 = vadd.f32 %v103, %v613
    %v615 = vpop.f32.mrb[0].mxu0
    %616 = vmatprep.mubr.f32.mxu0 0.0
    %617 = vmatmul.mubr.f32.gmra.mrb[0].mxu0 %v257
    %v618 = vpop.f32.mrb[0].mxu0
    %v619 = vadd.f32 %v103, %v618
    %v620 = vpop.f32.mrb[0].mxu0
    %621 = vmatprep.mubr.f32.mxu0 0.0
    %622 = vmatmul.mubr.f32.gmra.mrb[0].mxu0 %v260
    %v623 = vpop.f32.mrb[0].mxu0
    %v624 = vadd.f32 %v103, %v623
    %v625 = vpop.f32.mrb[0].mxu0
    %626 = vmatprep.mubr.f32.mxu0 0.0
    %627 = vmatmul.mubr.f32.gmra.mrb[0].mxu0 %v263
    %v628 = vpop.f32.mrb[0].mxu0
    %v629 = vadd.f32 %v103, %v628
    %v630 = vpop.f32.mrb[0].mxu0
    %631 = vmatprep.mubr.f32.mxu0 0.0
    %632 = vmatmul.mubr.f32.gmra.mrb[0].mxu0 %v266
    %v633 = vpop.f32.mrb[0].mxu0
    %v634 = vadd.f32 %v103, %v633
    %v635 = vpop.f32.mrb[0].mxu0
    %636 = vmatprep.mubr.f32.mxu0 0.0
    %637 = vmatmul.mubr.f32.gmra.mrb[0].mxu0 %v269
    %v638 = vpop.f32.mrb[0].mxu0
    %v639 = vadd.f32 %v103, %v638
    %v640 = vpop.f32.mrb[0].mxu0
    %641 = vmatprep.mubr.f32.mxu0 0.0
    %642 = vmatmul.mubr.f32.gmra.mrb[0].mxu0 %v272
    %v643 = vpop.f32.mrb[0].mxu0
    %v644 = vadd.f32 %v103, %v643
    %v645 = vpop.f32.mrb[0].mxu0
    %646 = vmatprep.mubr.f32.mxu0 0.0
    %647 = vmatmul.mubr.f32.gmra.mrb[0].mxu0 %v275
    %v648 = vpop.f32.mrb[0].mxu0
    %v649 = vadd.f32 %v103, %v648
    %v650 = vpop.f32.mrb[0].mxu0
    %651 = vmatprep.mubr.f32.mxu0 0.0
    %652 = vmatmul.mubr.f32.gmra.mrb[0].mxu0 %v278
    %v653 = vpop.f32.mrb[0].mxu0
    %v654 = vadd.f32 %v103, %v653
    %v655 = vpop.f32.mrb[0].mxu0
    %656 = vmatprep.mubr.f32.mxu0 0.0
    %657 = vmatmul.mubr.f32.gmra.mrb[0].mxu0 %v281
    %v658 = vpop.f32.mrb[0].mxu0
    %v659 = vadd.f32 %v103, %v658
    %v660 = vpop.f32.mrb[0].mxu0
    %661 = vmatprep.mubr.f32.mxu0 0.0
    %662 = vmatmul.mubr.f32.gmra.mrb[0].mxu0 %v284
    %v663 = vpop.f32.mrb[0].mxu0
    %v664 = vadd.f32 %v103, %v663
    %v665 = vpop.f32.mrb[0].mxu0
    %666 = vmatprep.mubr.f32.mxu0 0.0
    %667 = vmatmul.mubr.f32.gmra.mrb[0].mxu0 %v287
    %v668 = vpop.f32.mrb[0].mxu0
    %v669 = vadd.f32 %v103, %v668
    %v670 = vpop.f32.mrb[0].mxu0
    %671 = vmatprep.mubr.f32.mxu0 0.0
    %672 = vmatmul.mubr.f32.gmra.mrb[0].mxu0 %v290
    %v673 = vpop.f32.mrb[0].mxu0
    %v674 = vadd.f32 %v103, %v673
    %v675 = vpop.f32.mrb[0].mxu0
    %676 = vmatprep.mubr.f32.mxu0 0.0
    %677 = vmatmul.mubr.f32.gmra.mrb[0].mxu0 %v293
    %v678 = vpop.f32.mrb[0].mxu0
    %v679 = vadd.f32 %v103, %v678
    %v680 = vpop.f32.mrb[0].mxu0
    %681 = vmatprep.mubr.f32.mxu0 0.0
    %682 = vmatmul.mubr.f32.gmra.mrb[0].mxu0 %v296
    %v683 = vpop.f32.mrb[0].mxu0
    %v684 = vadd.f32 %v103, %v683
    %v685 = vpop.f32.mrb[0].mxu0
    %686 = vdwg.mxu0
    %v687 = vmax.f32 %v369, 0.0
    %v688 = vmax.f32 %v374, 0.0
    %v689 = vmax.f32 %v379, 0.0
    %v690 = vmax.f32 %v384, 0.0
    %v691 = vmax.f32 %v389, 0.0
    %v692 = vmax.f32 %v394, 0.0
    %v693 = vmax.f32 %v399, 0.0
    %v694 = vmax.f32 %v404, 0.0
    %v695 = vmax.f32 %v409, 0.0
    %v696 = vmax.f32 %v414, 0.0
    %v697 = vmax.f32 %v419, 0.0
    %v698 = vmax.f32 %v424, 0.0
    %v699 = vmax.f32 %v429, 0.0
    %v700 = vmax.f32 %v434, 0.0
    %v701 = vmax.f32 %v439, 0.0
    %v702 = vmax.f32 %v444, 0.0
    %v703 = vmax.f32 %v449, 0.0
    %v704 = vmax.f32 %v454, 0.0
    %v705 = vmax.f32 %v459, 0.0
    %v706 = vmax.f32 %v464, 0.0
    %v707 = vmax.f32 %v469, 0.0
    %v708 = vmax.f32 %v474, 0.0
    %v709 = vmax.f32 %v479, 0.0
    %v710 = vmax.f32 %v484, 0.0
    %v711 = vmax.f32 %v489, 0.0
    %v712 = vmax.f32 %v494, 0.0
    %v713 = vmax.f32 %v499, 0.0
    %v714 = vmax.f32 %v504, 0.0
    %v715 = vmax.f32 %v509, 0.0
    %v716 = vmax.f32 %v514, 0.0
    %v717 = vmax.f32 %v519, 0.0
    %v718 = vmax.f32 %v524, 0.0
    %v719 = vmax.f32 %v529, 0.0
    %v720 = vmax.f32 %v534, 0.0
    %v721 = vmax.f32 %v539, 0.0
    %v722 = vmax.f32 %v544, 0.0
    %v723 = vmax.f32 %v549, 0.0
    %v724 = vmax.f32 %v554, 0.0
    %v725 = vmax.f32 %v559, 0.0
    %v726 = vmax.f32 %v564, 0.0
    %v727 = vmax.f32 %v569, 0.0
    %v728 = vmax.f32 %v574, 0.0
    %v729 = vmax.f32 %v579, 0.0
    %v730 = vmax.f32 %v584, 0.0
    %v731 = vmax.f32 %v589, 0.0
    %v732 = vmax.f32 %v594, 0.0
    %v733 = vmax.f32 %v599, 0.0
    %v734 = vmax.f32 %v604, 0.0
    %v735 = vmax.f32 %v609, 0.0
    %v736 = vmax.f32 %v614, 0.0
    %v737 = vmax.f32 %v619, 0.0
    %v738 = vmax.f32 %v624, 0.0
    %v739 = vmax.f32 %v629, 0.0
    %v740 = vmax.f32 %v634, 0.0
    %v741 = vmax.f32 %v639, 0.0
    %v742 = vmax.f32 %v644, 0.0
    %v743 = vmax.f32 %v649, 0.0
    %v744 = vmax.f32 %v654, 0.0
    %v745 = vmax.f32 %v659, 0.0
    %v746 = vmax.f32 %v664, 0.0
    %v747 = vmax.f32 %v669, 0.0
    %v748 = vmax.f32 %v674, 0.0
    %v749 = vmax.f32 %v679, 0.0
    %v750 = vmax.f32 %v684, 0.0
    %v751 = vld [vmem:[%s3] sm:$0xff]
    %v752 = vld [vmem:[%s3 + $0x8] sm:$0xff]
    %v753 = vld [vmem:[%s3 + $0x10] sm:$0xff]
    %v754 = vld [vmem:[%s3 + $0x18] sm:$0xff]
    %755 = vmatprep.subr.mxu0 0.0
    %756 = vmatpush1.msra.mxu0 %v687
    %757 = vmatprep.subr.mxu0 0.0
    %758 = vmatpush1.msra.mxu0 %v688
    %759 = vmatprep.subr.mxu0 0.0
    %760 = vmatpush1.msra.mxu0 %v689
    %761 = vmatprep.subr.mxu0 0.0
    %762 = vmatpush1.msra.mxu0 %v690
    %763 = vmatprep.subr.mxu0 0.0
    %764 = vmatpush1.msra.mxu0 %v691
    %765 = vmatprep.subr.mxu0 0.0
    %766 = vmatpush1.msra.mxu0 %v692
    %767 = vmatprep.subr.mxu0 0.0
    %768 = vmatpush1.msra.mxu0 %v693
    %769 = vmatprep.subr.mxu0 0.0
    %770 = vmatpush1.msra.mxu0 %v694
    %771 = vmatprep.subr.mxu0 0.0
    %772 = vmatpush1.msra.mxu0 %v695
    %773 = vmatprep.subr.mxu0 0.0
    %774 = vmatpush1.msra.mxu0 %v696
    %775 = vmatprep.subr.mxu0 0.0
    %776 = vmatpush1.msra.mxu0 %v697
    %777 = vmatprep.subr.mxu0 0.0
    %778 = vmatpush1.msra.mxu0 %v698
    %779 = vmatprep.subr.mxu0 0.0
    %780 = vmatpush1.msra.mxu0 %v699
    %781 = vmatprep.subr.mxu0 0.0
    %782 = vmatpush1.msra.mxu0 %v700
    %783 = vmatprep.subr.mxu0 0.0
    %784 = vmatpush1.msra.mxu0 %v701
    %785 = vmatprep.subr.mxu0 0.0
    %786 = vmatpush1.msra.mxu0 %v702
    %787 = vmatprep.subr.mxu0 0.0
    %788 = vmatpush1.msra.mxu0 %v703
    %789 = vmatprep.subr.mxu0 0.0
    %790 = vmatpush1.msra.mxu0 %v704
    %791 = vmatprep.subr.mxu0 0.0
    %792 = vmatpush1.msra.mxu0 %v705
    %793 = vmatprep.subr.mxu0 0.0
    %794 = vmatpush1.msra.mxu0 %v706
    %795 = vmatprep.subr.mxu0 0.0
    %796 = vmatpush1.msra.mxu0 %v707
    %797 = vmatprep.subr.mxu0 0.0
    %798 = vmatpush1.msra.mxu0 %v708
    %799 = vmatprep.subr.mxu0 0.0
    %800 = vmatpush1.msra.mxu0 %v709
    %801 = vmatprep.subr.mxu0 0.0
    %802 = vmatpush1.msra.mxu0 %v710
    %803 = vmatprep.subr.mxu0 0.0
    %804 = vmatpush1.msra.mxu0 %v711
    %805 = vmatprep.subr.mxu0 0.0
    %806 = vmatpush1.msra.mxu0 %v712
    %807 = vmatprep.subr.mxu0 0.0
    %808 = vmatpush1.msra.mxu0 %v713
    %809 = vmatprep.subr.mxu0 0.0
    %810 = vmatpush1.msra.mxu0 %v714
    %811 = vmatprep.subr.mxu0 0.0
    %812 = vmatpush1.msra.mxu0 %v715
    %813 = vmatprep.subr.mxu0 0.0
    %814 = vmatpush1.msra.mxu0 %v716
    %815 = vmatprep.subr.mxu0 0.0
    %816 = vmatpush1.msra.mxu0 %v717
    %817 = vmatprep.subr.mxu0 0.0
    %818 = vmatpush1.msra.mxu0 %v718
    %819 = vmatprep.mubr.f32.mxu0 %v752
    %820 = vmatmul.mubr.f32.gmra.mrb[0].mxu0 %v751
    %v821 = vpop.f32.mrb[0].mxu0
    %v822 = vadd.f32 0.0, %v821
    %v823 = vpop.f32.mrb[0].mxu0
    %824 = vdwg.mxu0
    %825 = vmatprep.subr.mxu0 0.0
    %826 = vmatpush1.msra.mxu0 %v719
    %827 = vmatprep.subr.mxu0 0.0
    %828 = vmatpush1.msra.mxu0 %v720
    %829 = vmatprep.subr.mxu0 0.0
    %830 = vmatpush1.msra.mxu0 %v721
    %831 = vmatprep.subr.mxu0 0.0
    %832 = vmatpush1.msra.mxu0 %v722
    %833 = vmatprep.subr.mxu0 0.0
    %834 = vmatpush1.msra.mxu0 %v723
    %835 = vmatprep.subr.mxu0 0.0
    %836 = vmatpush1.msra.mxu0 %v724
    %837 = vmatprep.subr.mxu0 0.0
    %838 = vmatpush1.msra.mxu0 %v725
    %839 = vmatprep.subr.mxu0 0.0
    %840 = vmatpush1.msra.mxu0 %v726
    %841 = vmatprep.subr.mxu0 0.0
    %842 = vmatpush1.msra.mxu0 %v727
    %843 = vmatprep.subr.mxu0 0.0
    %844 = vmatpush1.msra.mxu0 %v728
    %845 = vmatprep.subr.mxu0 0.0
    %846 = vmatpush1.msra.mxu0 %v729
    %847 = vmatprep.subr.mxu0 0.0
    %848 = vmatpush1.msra.mxu0 %v730
    %849 = vmatprep.subr.mxu0 0.0
    %850 = vmatpush1.msra.mxu0 %v731
    %851 = vmatprep.subr.mxu0 0.0
    %852 = vmatpush1.msra.mxu0 %v732
    %853 = vmatprep.subr.mxu0 0.0
    %854 = vmatpush1.msra.mxu0 %v733
    %855 = vmatprep.subr.mxu0 0.0
    %856 = vmatpush1.msra.mxu0 %v734
    %857 = vmatprep.subr.mxu0 0.0
    %858 = vmatpush1.msra.mxu0 %v735
    %859 = vmatprep.subr.mxu0 0.0
    %860 = vmatpush1.msra.mxu0 %v736
    %861 = vmatprep.subr.mxu0 0.0
    %862 = vmatpush1.msra.mxu0 %v737
    %863 = vmatprep.subr.mxu0 0.0
    %864 = vmatpush1.msra.mxu0 %v738
    %865 = vmatprep.subr.mxu0 0.0
    %866 = vmatpush1.msra.mxu0 %v739
    %867 = vmatprep.subr.mxu0 0.0
    %868 = vmatpush1.msra.mxu0 %v740
    %869 = vmatprep.subr.mxu0 0.0
    %870 = vmatpush1.msra.mxu0 %v741
    %871 = vmatprep.subr.mxu0 0.0
    %872 = vmatpush1.msra.mxu0 %v742
    %873 = vmatprep.subr.mxu0 0.0
    %874 = vmatpush1.msra.mxu0 %v743
    %875 = vmatprep.subr.mxu0 0.0
    %876 = vmatpush1.msra.mxu0 %v744
    %877 = vmatprep.subr.mxu0 0.0
    %878 = vmatpush1.msra.mxu0 %v745
    %879 = vmatprep.subr.mxu0 0.0
    %880 = vmatpush1.msra.mxu0 %v746
    %881 = vmatprep.subr.mxu0 0.0
    %882 = vmatpush1.msra.mxu0 %v747
    %883 = vmatprep.subr.mxu0 0.0
    %884 = vmatpush1.msra.mxu0 %v748
    %885 = vmatprep.subr.mxu0 0.0
    %886 = vmatpush1.msra.mxu0 %v749
    %887 = vmatprep.subr.mxu0 0.0
    %888 = vmatpush1.msra.mxu0 %v750
    %889 = vmatprep.mubr.f32.mxu0 %v754
    %890 = vmatmul.mubr.f32.gmra.mrb[0].mxu0 %v753
    %v891 = vpop.f32.mrb[0].mxu0
    %v892 = vadd.f32 %v822, %v891
    %v893 = vpop.f32.mrb[0].mxu0
    %894 = vdwg.mxu0
    %v895 = vlaneseq
    %v896 = vand.u32 %v895, 127
    %897 = vmax.xlane.f32.xlu0 %v892
    %v898 = vpop.xlane.xlu0 %897
    %vm899 = vcmp.eq.f32.partialorder %v892, %v898
    %v900 = vsel %vm899, %v896, 128
    %v901 = vand.u32 %v900, 65535
    %v902 = vshra.s32 %v900, 16
    %v903 = vcvt.s32.f32 %v901
    %v904 = vcvt.s32.f32 %v902
    %905 = vmin.xlane.f32.xlu0 %v904
    %v906 = vpop.xlane.xlu0 %905
    %vm907 = vcmp.eq.f32.partialorder %v904, %v906
    %v908 = vsel %vm907, %v903, inf
    %909 = vmin.xlane.f32.xlu0 %v908
    %v910 = vpop.xlane.xlu0 %909
    %v911 = vcvt.f32.s32 %v910
    %v912 = vcvt.f32.s32 %v906
    %v913 = vshll.u32 %v912, 16
    %v914 = vadd.s32 %v913, %v911
    %vm915 = vcmp.eq.s32.totalorder %v896, %v914
    %v916 = vsel %vm915, 1, 0
    %v917 = vcvt.s32.f32 %v916
    %v918 = vld [vmem:[%s4] sm:$0xff]
    %v919 = vld [vmem:[%s4 + $0x8] sm:$0xff]
    %v920 = vld [vmem:[%s4 + $0x10] sm:$0xff]
    %v921 = vld [vmem:[%s4 + $0x18] sm:$0xff]
    %v922 = vld [vmem:[%s4 + $0x20] sm:$0xff]
    %v923 = vld [vmem:[%s4 + $0x28] sm:$0xff]
    %v924 = vld [vmem:[%s4 + $0x30] sm:$0xff]
    %v925 = vld [vmem:[%s4 + $0x38] sm:$0xff]
    %v926 = vld [vmem:[%s4 + $0x40] sm:$0xff]
    %v927 = vld [vmem:[%s4 + $0x48] sm:$0xff]
    %v928 = vld [vmem:[%s4 + $0x50] sm:$0xff]
    %v929 = vld [vmem:[%s4 + $0x58] sm:$0xff]
    %v930 = vld [vmem:[%s4 + $0x60] sm:$0xff]
    %v931 = vld [vmem:[%s4 + $0x68] sm:$0xff]
    %v932 = vld [vmem:[%s4 + $0x70] sm:$0xff]
    %v933 = vld [vmem:[%s4 + $0x78] sm:$0xff]
    %934 = vmatprep.subr.mxu0 0.0
    %935 = vmatpush1.msra.mxu0 %v918
    %936 = vmatprep.subr.mxu0 0.0
    %937 = vmatpush1.msra.mxu0 %v919
    %938 = vmatprep.subr.mxu0 0.0
    %939 = vmatpush1.msra.mxu0 %v920
    %940 = vmatprep.subr.mxu0 0.0
    %941 = vmatpush1.msra.mxu0 %v921
    %942 = vmatprep.subr.mxu0 0.0
    %943 = vmatpush1.msra.mxu0 %v922
    %944 = vmatprep.subr.mxu0 0.0
    %945 = vmatpush1.msra.mxu0 %v923
    %946 = vmatprep.subr.mxu0 0.0
    %947 = vmatpush1.msra.mxu0 %v924
    %948 = vmatprep.subr.mxu0 0.0
    %949 = vmatpush1.msra.mxu0 %v925
    %950 = vmatprep.subr.mxu0 0.0
    %951 = vmatpush1.msra.mxu0 %v926
    %952 = vmatprep.subr.mxu0 0.0
    %953 = vmatpush1.msra.mxu0 %v927
    %954 = vmatprep.subr.mxu0 0.0
    %955 = vmatpush1.msra.mxu0 %v928
    %956 = vmatprep.subr.mxu0 0.0
    %957 = vmatpush1.msra.mxu0 %v929
    %958 = vmatprep.subr.mxu0 0.0
    %959 = vmatpush1.msra.mxu0 %v930
    %960 = vmatprep.subr.mxu0 0.0
    %961 = vmatpush1.msra.mxu0 %v931
    %962 = vmatprep.subr.mxu0 0.0
    %963 = vmatpush1.msra.mxu0 %v932
    %964 = vmatprep.subr.mxu0 0.0
    %965 = vmatpush1.msra.mxu0 %v933
    %966 = vmatprep.subr.mxu0 0.0
    %967 = vmatpush1.msra.mxu0 0.0
    %968 = vmatprep.subr.mxu0 0.0
    %969 = vmatpush1.msra.mxu0 0.0
    %970 = vmatprep.subr.mxu0 0.0
    %971 = vmatpush1.msra.mxu0 0.0
    %972 = vmatprep.subr.mxu0 0.0
    %973 = vmatpush1.msra.mxu0 0.0
    %974 = vmatprep.subr.mxu0 0.0
    %975 = vmatpush1.msra.mxu0 0.0
    %976 = vmatprep.subr.mxu0 0.0
    %977 = vmatpush1.msra.mxu0 0.0
    %978 = vmatprep.subr.mxu0 0.0
    %979 = vmatpush1.msra.mxu0 0.0
    %980 = vmatprep.subr.mxu0 0.0
    %981 = vmatpush1.msra.mxu0 0.0
    %982 = vmatprep.subr.mxu0 0.0
    %983 = vmatpush1.msra.mxu0 0.0
    %984 = vmatprep.subr.mxu0 0.0
    %985 = vmatpush1.msra.mxu0 0.0
    %986 = vmatprep.subr.mxu0 0.0
    %987 = vmatpush1.msra.mxu0 0.0
    %988 = vmatprep.subr.mxu0 0.0
    %989 = vmatpush1.msra.mxu0 0.0
    %990 = vmatprep.subr.mxu0 0.0
    %991 = vmatpush1.msra.mxu0 0.0
    %992 = vmatprep.subr.mxu0 0.0
    %993 = vmatpush1.msra.mxu0 0.0
    %994 = vmatprep.subr.mxu0 0.0
    %995 = vmatpush1.msra.mxu0 0.0
    %996 = vmatprep.subr.mxu0 0.0
    %997 = vmatpush1.msra.mxu0 0.0
    %998 = vmatprep.mubr.f32.mxu0 0.0
    %999 = vmatmul.mubr.f32.gmra.mrb[0].mxu0 %v917
    %v1000 = vpop.f32.mrb[0].mxu0
    %v1001 = vadd.f32 0.0, %v1000
    %v1002 = vpop.f32.mrb[0].mxu0
    %1003 = vdwg.mxu0
    %v1004 = vld [vmem:[%s5] sm:$0xff]
    %v1005 = vld [vmem:[%s5 + $0x8] sm:$0xff]
    %v1006 = vld [vmem:[%s5 + $0x10] sm:$0xff]
    %v1007 = vld [vmem:[%s5 + $0x18] sm:$0xff]
    %v1008 = vld [vmem:[%s5 + $0x20] sm:$0xff]
    %v1009 = vld [vmem:[%s5 + $0x28] sm:$0xff]
    %v1010 = vld [vmem:[%s5 + $0x30] sm:$0xff]
    %v1011 = vld [vmem:[%s5 + $0x38] sm:$0xff]
    %v1012 = vld [vmem:[%s5 + $0x40] sm:$0xff]
    %v1013 = vld [vmem:[%s5 + $0x48] sm:$0xff]
    %v1014 = vld [vmem:[%s5 + $0x50] sm:$0xff]
    %v1015 = vld [vmem:[%s5 + $0x58] sm:$0xff]
    %v1016 = vld [vmem:[%s5 + $0x60] sm:$0xff]
    %v1017 = vld [vmem:[%s5 + $0x68] sm:$0xff]
    %v1018 = vld [vmem:[%s5 + $0x70] sm:$0xff]
    %v1019 = vld [vmem:[%s5 + $0x78] sm:$0xff]
    %v1020 = vld [vmem:[%s6] sm:$0x1]
    %v1022 = vlaneseq
    %v1023 = vshrl.u32 %v1022, 7
    %v1024 = vsub.s32 0, %v1023
    %v1025 = vrot.slane %v1020, %v1024
    %1027 = vmatprep.subr.mxu0 0.0
    %1028 = vmatpush1.msra.mxu0 %v1004
    %1029 = vmatprep.subr.mxu0 0.0
    %1030 = vmatpush1.msra.mxu0 %v1005
    %1031 = vmatprep.subr.mxu0 0.0
    %1032 = vmatpush1.msra.mxu0 %v1006
    %1033 = vmatprep.subr.mxu0 0.0
    %1034 = vmatpush1.msra.mxu0 %v1007
    %1035 = vmatprep.subr.mxu0 0.0
    %1036 = vmatpush1.msra.mxu0 %v1008
    %1037 = vmatprep.subr.mxu0 0.0
    %1038 = vmatpush1.msra.mxu0 %v1009
    %1039 = vmatprep.subr.mxu0 0.0
    %1040 = vmatpush1.msra.mxu0 %v1010
    %1041 = vmatprep.subr.mxu0 0.0
    %1042 = vmatpush1.msra.mxu0 %v1011
    %1043 = vmatprep.subr.mxu0 0.0
    %1044 = vmatpush1.msra.mxu0 %v1012
    %1045 = vmatprep.subr.mxu0 0.0
    %1046 = vmatpush1.msra.mxu0 %v1013
    %1047 = vmatprep.subr.mxu0 0.0
    %1048 = vmatpush1.msra.mxu0 %v1014
    %1049 = vmatprep.subr.mxu0 0.0
    %1050 = vmatpush1.msra.mxu0 %v1015
    %1051 = vmatprep.subr.mxu0 0.0
    %1052 = vmatpush1.msra.mxu0 %v1016
    %1053 = vmatprep.subr.mxu0 0.0
    %1054 = vmatpush1.msra.mxu0 %v1017
    %1055 = vmatprep.subr.mxu0 0.0
    %1056 = vmatpush1.msra.mxu0 %v1018
    %1057 = vmatprep.subr.mxu0 0.0
    %1058 = vmatpush1.msra.mxu0 %v1019
    %1059 = vmatprep.subr.mxu0 0.0
    %1060 = vmatpush1.msra.mxu0 0.0
    %1061 = vmatprep.subr.mxu0 0.0
    %1062 = vmatpush1.msra.mxu0 0.0
    %1063 = vmatprep.subr.mxu0 0.0
    %1064 = vmatpush1.msra.mxu0 0.0
    %1065 = vmatprep.subr.mxu0 0.0
    %1066 = vmatpush1.msra.mxu0 0.0
    %1067 = vmatprep.subr.mxu0 0.0
    %1068 = vmatpush1.msra.mxu0 0.0
    %1069 = vmatprep.subr.mxu0 0.0
    %1070 = vmatpush1.msra.mxu0 0.0
    %1071 = vmatprep.subr.mxu0 0.0
    %1072 = vmatpush1.msra.mxu0 0.0
    %1073 = vmatprep.subr.mxu0 0.0
    %1074 = vmatpush1.msra.mxu0 0.0
    %1075 = vmatprep.subr.mxu0 0.0
    %1076 = vmatpush1.msra.mxu0 0.0
    %1077 = vmatprep.subr.mxu0 0.0
    %1078 = vmatpush1.msra.mxu0 0.0
    %1079 = vmatprep.subr.mxu0 0.0
    %1080 = vmatpush1.msra.mxu0 0.0
    %1081 = vmatprep.subr.mxu0 0.0
    %1082 = vmatpush1.msra.mxu0 0.0
    %1083 = vmatprep.subr.mxu0 0.0
    %1084 = vmatpush1.msra.mxu0 0.0
    %1085 = vmatprep.subr.mxu0 0.0
    %1086 = vmatpush1.msra.mxu0 0.0
    %1087 = vmatprep.subr.mxu0 0.0
    %1088 = vmatpush1.msra.mxu0 0.0
    %1089 = vmatprep.subr.mxu0 0.0
    %1090 = vmatpush1.msra.mxu0 0.0
    %1091 = vmatprep.mubr.f32.mxu0 0.0
    %1092 = vmatmul.mubr.f32.gmra.mrb[0].mxu0 %v1001
    %v1093 = vpop.f32.mrb[0].mxu0
    %v1094 = vadd.f32 %v1025, %v1093
    %v1095 = vpop.f32.mrb[0].mxu0
    %1096 = vdwg.mxu0
    %v1097 = vmax.f32 %v1094, 0.0
    %v1098 = vld [vmem:[%s7] sm:$0xff]
    %v1099 = vld [vmem:[%s7 + $0x8] sm:$0xff]
    %v1100 = vld [vmem:[%s7 + $0x10] sm:$0xff]
    %v1101 = vld [vmem:[%s7 + $0x18] sm:$0xff]
    %v1102 = vld [vmem:[%s7 + $0x20] sm:$0xff]
    %v1103 = vld [vmem:[%s7 + $0x28] sm:$0xff]
    %v1104 = vld [vmem:[%s7 + $0x30] sm:$0xff]
    %v1105 = vld [vmem:[%s7 + $0x38] sm:$0xff]
    %v1106 = vld [vmem:[%s7 + $0x40] sm:$0xff]
    %v1107 = vld [vmem:[%s7 + $0x48] sm:$0xff]
    %v1108 = vld [vmem:[%s7 + $0x50] sm:$0xff]
    %v1109 = vld [vmem:[%s7 + $0x58] sm:$0xff]
    %v1110 = vld [vmem:[%s7 + $0x60] sm:$0xff]
    %v1111 = vld [vmem:[%s7 + $0x68] sm:$0xff]
    %v1112 = vld [vmem:[%s7 + $0x70] sm:$0xff]
    %v1113 = vld [vmem:[%s7 + $0x78] sm:$0xff]
    %v1114 = vld [vmem:[%s8] sm:$0x1]
    %v1116 = vlaneseq
    %v1117 = vshrl.u32 %v1116, 7
    %v1118 = vsub.s32 0, %v1117
    %v1119 = vrot.slane %v1114, %v1118
    %1121 = vmatprep.subr.mxu0 0.0
    %1122 = vmatpush1.msra.mxu0 %v1098
    %1123 = vmatprep.subr.mxu0 0.0
    %1124 = vmatpush1.msra.mxu0 %v1099
    %1125 = vmatprep.subr.mxu0 0.0
    %1126 = vmatpush1.msra.mxu0 %v1100
    %1127 = vmatprep.subr.mxu0 0.0
    %1128 = vmatpush1.msra.mxu0 %v1101
    %1129 = vmatprep.subr.mxu0 0.0
    %1130 = vmatpush1.msra.mxu0 %v1102
    %1131 = vmatprep.subr.mxu0 0.0
    %1132 = vmatpush1.msra.mxu0 %v1103
    %1133 = vmatprep.subr.mxu0 0.0
    %1134 = vmatpush1.msra.mxu0 %v1104
    %1135 = vmatprep.subr.mxu0 0.0
    %1136 = vmatpush1.msra.mxu0 %v1105
    %1137 = vmatprep.subr.mxu0 0.0
    %1138 = vmatpush1.msra.mxu0 %v1106
    %1139 = vmatprep.subr.mxu0 0.0
    %1140 = vmatpush1.msra.mxu0 %v1107
    %1141 = vmatprep.subr.mxu0 0.0
    %1142 = vmatpush1.msra.mxu0 %v1108
    %1143 = vmatprep.subr.mxu0 0.0
    %1144 = vmatpush1.msra.mxu0 %v1109
    %1145 = vmatprep.subr.mxu0 0.0
    %1146 = vmatpush1.msra.mxu0 %v1110
    %1147 = vmatprep.subr.mxu0 0.0
    %1148 = vmatpush1.msra.mxu0 %v1111
    %1149 = vmatprep.subr.mxu0 0.0
    %1150 = vmatpush1.msra.mxu0 %v1112
    %1151 = vmatprep.subr.mxu0 0.0
    %1152 = vmatpush1.msra.mxu0 %v1113
    %1153 = vmatprep.subr.mxu0 0.0
    %1154 = vmatpush1.msra.mxu0 0.0
    %1155 = vmatprep.subr.mxu0 0.0
    %1156 = vmatpush1.msra.mxu0 0.0
    %1157 = vmatprep.subr.mxu0 0.0
    %1158 = vmatpush1.msra.mxu0 0.0
    %1159 = vmatprep.subr.mxu0 0.0
    %1160 = vmatpush1.msra.mxu0 0.0
    %1161 = vmatprep.subr.mxu0 0.0
    %1162 = vmatpush1.msra.mxu0 0.0
    %1163 = vmatprep.subr.mxu0 0.0
    %1164 = vmatpush1.msra.mxu0 0.0
    %1165 = vmatprep.subr.mxu0 0.0
    %1166 = vmatpush1.msra.mxu0 0.0
    %1167 = vmatprep.subr.mxu0 0.0
    %1168 = vmatpush1.msra.mxu0 0.0
    %1169 = vmatprep.subr.mxu0 0.0
    %1170 = vmatpush1.msra.mxu0 0.0
    %1171 = vmatprep.subr.mxu0 0.0
    %1172 = vmatpush1.msra.mxu0 0.0
    %1173 = vmatprep.subr.mxu0 0.0
    %1174 = vmatpush1.msra.mxu0 0.0
    %1175 = vmatprep.subr.mxu0 0.0
    %1176 = vmatpush1.msra.mxu0 0.0
    %1177 = vmatprep.subr.mxu0 0.0
    %1178 = vmatpush1.msra.mxu0 0.0
    %1179 = vmatprep.subr.mxu0 0.0
    %1180 = vmatpush1.msra.mxu0 0.0
    %1181 = vmatprep.subr.mxu0 0.0
    %1182 = vmatpush1.msra.mxu0 0.0
    %1183 = vmatprep.subr.mxu0 0.0
    %1184 = vmatpush1.msra.mxu0 0.0
    %1185 = vmatprep.mubr.f32.mxu0 0.0
    %1186 = vmatmul.mubr.f32.gmra.mrb[0].mxu0 %v1097
    %v1187 = vpop.f32.mrb[0].mxu0
    %v1188 = vadd.f32 %v1119, %v1187
    %v1189 = vpop.f32.mrb[0].mxu0
    %1190 = vdwg.mxu0
    %1191 = vst [vmem:[#allocation2] sm:$0xff] %v1188
    // Predicated region
    $region38: #{tpu_custom_call.1} parent=1 // pred_check
      _
    $region39: #{tpu_custom_call.1} parent=1 // pred_check_branch
      %1193 = sbr.rel (0) target = $region41
    $region40: #{tpu_custom_call.1} parent=1 // pred_region
      %s1195 = ssub.s32 128, 128
      %1196 = vsyncadd [#allocation3], %s1195
      %s1198 = sshll.u32 [#allocation2], 4
      %s1199 = int_to_ptr.vmem [resolvable:$true] %s1198
      %1201 = dma.vmem_to_hbm [thread:$0]  %s1199, 128, %s9, [#allocation3]
    $region41: #{tpu_custom_call.1} parent=1 // pred_fallthru
      _
    // Predicated region
    $region42: #{tpu_custom_call.1} parent=1 // pred_check
      _
    $region43: #{tpu_custom_call.1} parent=1 // pred_check_branch
      %1203 = sbr.rel (0) target = $region45
    $region44: #{tpu_custom_call.1} parent=1 // pred_region
      %1204 = dma.done [#allocation3], 128
    $region45: #{tpu_custom_call.1} parent=1 // pred_fallthru
      _
    %1205 = vsyncpa [#allocation3], 1

</llo_original>
